<compile_context>
chip_gen: v5e
topology: v5e:2x2
jax: 0.10.0
libtpu: 0.0.40
codegen_flags: <defaults>
</compile_context>

<pallas_src>
import jax
import jax.numpy as jnp
from jax.experimental import pallas as pl
from jax.experimental.pallas import tpu as pltpu


def _round_up(v, m):
    return (v + m - 1) // m * m


def conv2d_relu_forward(x_nchw, a_nchw, weight_oihw, bias, *, stride=1, nb=2):
    assert stride == 1, "shifted-slice direct conv assumes stride 1 (module default)"
    N, Cin, H, W = x_nchw.shape
    Cout, _, KH, KW = weight_oihw.shape
    OH = H - KH + 1
    OW = W - KW + 1

    # Output laid out on the flat input grid p = oh*W + ow (lane dim).
    P = _round_up(OH * W, 128)              # lane-dense padded output width
    s_max = (KH - 1) * W + (KW - 1)         # largest tap shift into x
    HWp = _round_up(P + s_max, 128)         # padded flat-x length (>= H*W)
    K = KH * KW * Cin                       # stacked contraction depth
    Kpad = _round_up(K, 16)                 # bf16 sublane packing (16 rows/vreg)

    Nb = max(1, min(nb, N))                 # images per grid step
    Np = _round_up(N, Nb)

    # ---- layout glue: reshape / zero-pad only, no compute, no duplication ----
    x_flat = jnp.pad(x_nchw.reshape(N, Cin, H * W).astype(jnp.float32),
                     ((0, Np - N), (0, 0), (0, HWp - H * W)))       # (Np,Cin,HWp)
    # weights flattened tap-major: column index = (kh*KW + kw)*Cin + cin
    w_flat = jnp.transpose(weight_oihw, (0, 2, 3, 1)).reshape(Cout, K)
    w_flat = jnp.pad(w_flat, ((0, 0), (0, Kpad - K))).astype(jnp.bfloat16)
    b_col = bias.reshape(Cout, 1).astype(jnp.float32)
    a_p = jnp.pad(a_nchw.astype(jnp.float32),
                  ((0, Np - N), (0, 0), (0, 0), (0, W - OW)))       # (Np,Cout,OH,W)
    a_p = jnp.pad(a_p.reshape(Np, Cout, OH * W),
                  ((0, 0), (0, 0), (0, P - OH * W)))                # (Np,Cout,P)

    taps = [(kh, kw) for kh in range(KH) for kw in range(KW)]

    def kernel(x_ref, w_ref, b_ref, a_ref, o_ref):
        # x_ref: (Nb,Cin,HWp) f32   w_ref: (Cout,Kpad) bf16
        # b_ref: (Cout,1) f32       a_ref / o_ref: (Nb,Cout,P)
        w = w_ref[...]                                     # resident across grid
        b = b_ref[...]
        for n in range(Nb):                                # static unroll: Nb small
            x_all = x_ref[n]                               # (Cin, HWp) f32
            # im2col-in-VMEM: stack the KH*KW lane-shifted slices once,
            # then a single stacked-K MXU matmul.
            pieces = [x_all[:, kh * W + kw: kh * W + kw + P] for kh, kw in taps]
            if Kpad > K:
                pieces.append(jnp.zeros((Kpad - K, P), jnp.float32))
            stacked = jnp.concatenate(pieces, axis=0).astype(jnp.bfloat16)  # (Kpad,P)
            acc = jnp.dot(w, stacked,
                          preferred_element_type=jnp.float32)              # (Cout,P)
            acc = acc + b + a_ref[n]                       # bias + residual `a`
            o_ref[n] = jnp.maximum(acc, 0.0).astype(o_ref.dtype)

    flops = 2 * N * Cout * Cin * KH * KW * OH * OW
    bytes_accessed = (x_flat.size * 4 + w_flat.size * 2 + b_col.size * 4
                      + a_p.size * 4 + Np * Cout * P * 4)

    out_p = pl.pallas_call(
        kernel,
        out_shape=jax.ShapeDtypeStruct((Np, Cout, P), jnp.float32),
        grid_spec=pltpu.PrefetchScalarGridSpec(
            num_scalar_prefetch=0,
            grid=(Np // Nb,),                              # Nb images per step
            in_specs=[
                pl.BlockSpec((Nb, Cin, HWp), lambda g: (g, 0, 0)),
                pl.BlockSpec((Cout, Kpad), lambda g: (0, 0)),
                pl.BlockSpec((Cout, 1), lambda g: (0, 0)),
                pl.BlockSpec((Nb, Cout, P), lambda g: (g, 0, 0)),
            ],
            out_specs=pl.BlockSpec((Nb, Cout, P), lambda g: (g, 0, 0)),
        ),
        compiler_params=pltpu.CompilerParams(
            dimension_semantics=("parallel",)),
        cost_estimate=pl.CostEstimate(
            flops=flops, transcendentals=0, bytes_accessed=bytes_accessed),
    )(x_flat, w_flat, b_col, a_p)

    # (Np, Cout, P) -> (N, Cout, OH, OW): already NCHW-ordered, pure slice+reshape.
    return out_p[:N, :, :OH * W].reshape(N, Cout, OH, W)[:, :, :, :OW]


if __name__ == "__main__":
    # Conv2d(in_channels=4, out_channels=8, kernel_size=3) — stride 1, no padding
    N, Cin, Cout, H, W, KH = 2, 4, 8, 16, 16, 3
    OH = OW = H - KH + 1

    key = jax.random.PRNGKey(0)
    k1, k2, k3, k4 = jax.random.split(key, 4)
    x = jax.random.normal(k1, (N, Cin, H, W), jnp.float32)
    a = jax.random.normal(k2, (N, Cout, OH, OW), jnp.float32)
    bound = 1.0 / (Cin * KH * KH) ** 0.5            # PyTorch-style fan-in bound
    weight = jax.random.uniform(k3, (Cout, Cin, KH, KH), jnp.float32, -bound, bound)
    bias = jax.random.uniform(k4, (Cout,), jnp.float32, -bound, bound)

    out = conv2d_relu_forward(x, a, weight, bias)
    out = jax.block_until_ready(out)

    # pure-JAX f32 reference check (kernel uses bf16 MXU operands -> 2e-2 tol)
    ref = jax.lax.conv_general_dilated(
        x, weight, window_strides=(1, 1), padding="VALID",
        dimension_numbers=("NCHW", "OIHW", "NCHW"))
    ref = jnp.maximum(ref + bias[None, :, None, None] + a, 0.0)
    assert out.shape == (N, Cout, OH, OW)
    assert jnp.allclose(out, ref, atol=2e-2, rtol=2e-2)
    print("KERNEL_OK")
</pallas_src>

<mosaic_0001>
module attributes {stable_mosaic.version = 11 : i64} {
  func.func @kernel(%arg0: i32, %arg1: memref<2x4x384xf32, #tpu.memory_space<vmem>>, %arg2: memref<8x48xbf16, #tpu.memory_space<vmem>>, %arg3: memref<8x1xf32, #tpu.memory_space<vmem>>, %arg4: memref<2x8x256xf32, #tpu.memory_space<vmem>>, %arg5: memref<2x8x256xf32, #tpu.memory_space<vmem>>) attributes {dimension_semantics = [#tpu.dimension_semantics<parallel>], iteration_bounds = array<i64: 1>, scalar_prefetch = 0 : i64, scratch_operands = 0 : i64, tpu.core_type = #tpu.core_type<tc>, window_params = [{transform_indices = @transform_0, window_bounds = array<i64: 2, 4, 384>}, {pipeline_mode = #tpu.pipeline_mode<synchronous>, transform_indices = @transform_1, window_bounds = array<i64: 8, 48>}, {pipeline_mode = #tpu.pipeline_mode<synchronous>, transform_indices = @transform_2, window_bounds = array<i64: 8, 1>}, {transform_indices = @transform_3, window_bounds = array<i64: 2, 8, 256>}, {transform_indices = @transform_4, window_bounds = array<i64: 2, 8, 256>}]} {
    %c0 = arith.constant 0 : index
    %c0_0 = arith.constant 0 : index
    %0 = vector.load %arg2[%c0, %c0_0] : memref<8x48xbf16, #tpu.memory_space<vmem>>, vector<8x48xbf16>
    %c0_1 = arith.constant 0 : index
    %c0_2 = arith.constant 0 : index
    %1 = vector.load %arg3[%c0_1, %c0_2] : memref<8x1xf32, #tpu.memory_space<vmem>>, vector<8x1xf32>
    %c0_3 = arith.constant 0 : index
    %c0_4 = arith.constant 0 : index
    %c0_5 = arith.constant 0 : index
    %2 = vector.load %arg1[%c0_3, %c0_4, %c0_5] : memref<2x4x384xf32, #tpu.memory_space<vmem>>, vector<1x4x384xf32>
    %3 = vector.shape_cast %2 : vector<1x4x384xf32> to vector<4x384xf32>
    %4 = vector.extract_strided_slice %3 {offsets = [0, 0], sizes = [4, 256], strides = [1, 1]} : vector<4x384xf32> to vector<4x256xf32>
    %5 = vector.extract_strided_slice %3 {offsets = [0, 1], sizes = [4, 256], strides = [1, 1]} : vector<4x384xf32> to vector<4x256xf32>
    %6 = vector.extract_strided_slice %3 {offsets = [0, 2], sizes = [4, 256], strides = [1, 1]} : vector<4x384xf32> to vector<4x256xf32>
    %7 = vector.extract_strided_slice %3 {offsets = [0, 16], sizes = [4, 256], strides = [1, 1]} : vector<4x384xf32> to vector<4x256xf32>
    %8 = vector.extract_strided_slice %3 {offsets = [0, 17], sizes = [4, 256], strides = [1, 1]} : vector<4x384xf32> to vector<4x256xf32>
    %9 = vector.extract_strided_slice %3 {offsets = [0, 18], sizes = [4, 256], strides = [1, 1]} : vector<4x384xf32> to vector<4x256xf32>
    %10 = vector.extract_strided_slice %3 {offsets = [0, 32], sizes = [4, 256], strides = [1, 1]} : vector<4x384xf32> to vector<4x256xf32>
    %11 = vector.extract_strided_slice %3 {offsets = [0, 33], sizes = [4, 256], strides = [1, 1]} : vector<4x384xf32> to vector<4x256xf32>
    %12 = vector.extract_strided_slice %3 {offsets = [0, 34], sizes = [4, 256], strides = [1, 1]} : vector<4x384xf32> to vector<4x256xf32>
    %cst = arith.constant 0.000000e+00 : f32
    %13 = vector.broadcast %cst : f32 to vector<12x256xf32>
    %14 = tpu.concatenate %4, %5, %6, %7, %8, %9, %10, %11, %12, %13 in 0 : vector<4x256xf32>, vector<4x256xf32>, vector<4x256xf32>, vector<4x256xf32>, vector<4x256xf32>, vector<4x256xf32>, vector<4x256xf32>, vector<4x256xf32>, vector<4x256xf32>, vector<12x256xf32> -> vector<48x256xf32>
    %15 = arith.truncf %14 : vector<48x256xf32> to vector<48x256xbf16>
    %cst_6 = arith.constant dense<0.000000e+00> : vector<8x256xf32>
    %16 = tpu.matmul %0, %15, %cst_6 {dimension_numbers = #tpu.dot_dimension_numbers<[1], [0], [0], [1], [0, 0, 1, 1], [], []>} : vector<8x48xbf16>, vector<48x256xbf16>, vector<8x256xf32> -> vector<8x256xf32>
    %17 = vector.broadcast %1 : vector<8x1xf32> to vector<8x256xf32>
    %18 = arith.addf %16, %17 : vector<8x256xf32>
    %c0_7 = arith.constant 0 : index
    %c0_8 = arith.constant 0 : index
    %c0_9 = arith.constant 0 : index
    %19 = vector.load %arg4[%c0_7, %c0_8, %c0_9] : memref<2x8x256xf32, #tpu.memory_space<vmem>>, vector<1x8x256xf32>
    %20 = vector.shape_cast %19 : vector<1x8x256xf32> to vector<8x256xf32>
    %21 = arith.addf %18, %20 : vector<8x256xf32>
    %cst_10 = arith.constant 0.000000e+00 : f32
    %22 = vector.broadcast %cst_10 : f32 to vector<8x256xf32>
    %23 = arith.maximumf %21, %22 : vector<8x256xf32>
    %c0_11 = arith.constant 0 : index
    %c0_12 = arith.constant 0 : index
    %c0_13 = arith.constant 0 : index
    %24 = vector.load %arg5[%c0_11, %c0_12, %c0_13] : memref<2x8x256xf32, #tpu.memory_space<vmem>>, vector<1x8x256xf32>
    %25 = vector.shape_cast %24 : vector<1x8x256xf32> to vector<8x256xf32>
    %26 = vector.shape_cast %23 : vector<8x256xf32> to vector<1x8x256xf32>
    tpu.vector_store %arg5[%c0_11, %c0_12, %c0_13], %26 {strides = array<i32>} : memref<2x8x256xf32, #tpu.memory_space<vmem>>, vector<1x8x256xf32>,
    %c1 = arith.constant 1 : index
    %c0_14 = arith.constant 0 : index
    %c0_15 = arith.constant 0 : index
    %27 = vector.load %arg1[%c1, %c0_14, %c0_15] : memref<2x4x384xf32, #tpu.memory_space<vmem>>, vector<1x4x384xf32>
    %28 = vector.shape_cast %27 : vector<1x4x384xf32> to vector<4x384xf32>
    %29 = vector.extract_strided_slice %28 {offsets = [0, 0], sizes = [4, 256], strides = [1, 1]} : vector<4x384xf32> to vector<4x256xf32>
    %30 = vector.extract_strided_slice %28 {offsets = [0, 1], sizes = [4, 256], strides = [1, 1]} : vector<4x384xf32> to vector<4x256xf32>
    %31 = vector.extract_strided_slice %28 {offsets = [0, 2], sizes = [4, 256], strides = [1, 1]} : vector<4x384xf32> to vector<4x256xf32>
    %32 = vector.extract_strided_slice %28 {offsets = [0, 16], sizes = [4, 256], strides = [1, 1]} : vector<4x384xf32> to vector<4x256xf32>
    %33 = vector.extract_strided_slice %28 {offsets = [0, 17], sizes = [4, 256], strides = [1, 1]} : vector<4x384xf32> to vector<4x256xf32>
    %34 = vector.extract_strided_slice %28 {offsets = [0, 18], sizes = [4, 256], strides = [1, 1]} : vector<4x384xf32> to vector<4x256xf32>
    %35 = vector.extract_strided_slice %28 {offsets = [0, 32], sizes = [4, 256], strides = [1, 1]} : vector<4x384xf32> to vector<4x256xf32>
    %36 = vector.extract_strided_slice %28 {offsets = [0, 33], sizes = [4, 256], strides = [1, 1]} : vector<4x384xf32> to vector<4x256xf32>
    %37 = vector.extract_strided_slice %28 {offsets = [0, 34], sizes = [4, 256], strides = [1, 1]} : vector<4x384xf32> to vector<4x256xf32>
    %cst_16 = arith.constant 0.000000e+00 : f32
    %38 = vector.broadcast %cst_16 : f32 to vector<12x256xf32>
    %39 = tpu.concatenate %29, %30, %31, %32, %33, %34, %35, %36, %37, %38 in 0 : vector<4x256xf32>, vector<4x256xf32>, vector<4x256xf32>, vector<4x256xf32>, vector<4x256xf32>, vector<4x256xf32>, vector<4x256xf32>, vector<4x256xf32>, vector<4x256xf32>, vector<12x256xf32> -> vector<48x256xf32>
    %40 = arith.truncf %39 : vector<48x256xf32> to vector<48x256xbf16>
    %cst_17 = arith.constant dense<0.000000e+00> : vector<8x256xf32>
    %41 = tpu.matmul %0, %40, %cst_17 {dimension_numbers = #tpu.dot_dimension_numbers<[1], [0], [0], [1], [0, 0, 1, 1], [], []>} : vector<8x48xbf16>, vector<48x256xbf16>, vector<8x256xf32> -> vector<8x256xf32>
    %42 = vector.broadcast %1 : vector<8x1xf32> to vector<8x256xf32>
    %43 = arith.addf %41, %42 : vector<8x256xf32>
    %c1_18 = arith.constant 1 : index
    %c0_19 = arith.constant 0 : index
    %c0_20 = arith.constant 0 : index
    %44 = vector.load %arg4[%c1_18, %c0_19, %c0_20] : memref<2x8x256xf32, #tpu.memory_space<vmem>>, vector<1x8x256xf32>
    %45 = vector.shape_cast %44 : vector<1x8x256xf32> to vector<8x256xf32>
    %46 = arith.addf %43, %45 : vector<8x256xf32>
    %cst_21 = arith.constant 0.000000e+00 : f32
    %47 = vector.broadcast %cst_21 : f32 to vector<8x256xf32>
    %48 = arith.maximumf %46, %47 : vector<8x256xf32>
    %c1_22 = arith.constant 1 : index
    %c0_23 = arith.constant 0 : index
    %c0_24 = arith.constant 0 : index
    %49 = vector.load %arg5[%c1_22, %c0_23, %c0_24] : memref<2x8x256xf32, #tpu.memory_space<vmem>>, vector<1x8x256xf32>
    %50 = vector.shape_cast %49 : vector<1x8x256xf32> to vector<8x256xf32>
    %51 = vector.shape_cast %48 : vector<8x256xf32> to vector<1x8x256xf32>
    tpu.vector_store %arg5[%c1_22, %c0_23, %c0_24], %51 {strides = array<i32>} : memref<2x8x256xf32, #tpu.memory_space<vmem>>, vector<1x8x256xf32>,
    return
  }
  func.func @transform_0(%arg0: i32) -> (i32, i32, i32) {
    %c0_i32 = arith.constant 0 : i32
    %c0_i32_0 = arith.constant 0 : i32
    %c0_i32_1 = arith.constant 0 : i32
    return %arg0, %c0_i32, %c0_i32_0 : i32, i32, i32
  }
  func.func @transform_1(%arg0: i32) -> (i32, i32) {
    %c0_i32 = arith.constant 0 : i32
    %c0_i32_0 = arith.constant 0 : i32
    %c0_i32_1 = arith.constant 0 : i32
    return %c0_i32, %c0_i32_0 : i32, i32
  }
  func.func @transform_2(%arg0: i32) -> (i32, i32) {
    %c0_i32 = arith.constant 0 : i32
    %c0_i32_0 = arith.constant 0 : i32
    %c0_i32_1 = arith.constant 0 : i32
    return %c0_i32, %c0_i32_0 : i32, i32
  }
  func.func @transform_3(%arg0: i32) -> (i32, i32, i32) {
    %c0_i32 = arith.constant 0 : i32
    %c0_i32_0 = arith.constant 0 : i32
    %c0_i32_1 = arith.constant 0 : i32
    return %arg0, %c0_i32, %c0_i32_0 : i32, i32, i32
  }
  func.func @transform_4(%arg0: i32) -> (i32, i32, i32) {
    %c0_i32 = arith.constant 0 : i32
    %c0_i32_0 = arith.constant 0 : i32
    %c0_i32_1 = arith.constant 0 : i32
    return %arg0, %c0_i32, %c0_i32_0 : i32, i32, i32
  }
}

</mosaic_0001>

<llo_original>
// kernel: tpu_custom_call.1
$region0: #{tpu_custom_call.1}
  #allocation0 [shape = 'u32[]', space=smem, size = 0x4, offset = 0x4, fixed_abs, tag = 'smem constant byte address 0x4 - core index']
  #allocation1 [shape = 'u32[72,128]{1,0:T(1,128)}', space=vmem, size = 0x9000, scoped, tag = 'internal scratch']
  %s0 = inlined_call_operand.hbm [shape: f32[2,4,384], index: 0, kind: input, shape index: {}]
  %s1 = inlined_call_operand.vmem [shape: bf16[8,48], index: 1, kind: input, shape index: {}]
  %s2 = inlined_call_operand.vmem [shape: f32[8,1], index: 2, kind: input, shape index: {}]
  %s3 = inlined_call_operand.hbm [shape: f32[2,8,256], index: 3, kind: input, shape index: {}]
  %s4 = inlined_call_operand.hbm [shape: f32[2,8,256], index: 4, kind: output, shape index: {}]
  %s5 = sld [smem:[#allocation0]]
  $region34: #{tpu_custom_call.1} parent=0
    _
  %s7 = ssub.s32 1, %s5
  %s8 = scalar_select 0, %s7, %s5
  $region1: #{tpu_custom_call.1} parent=0
    #allocation2 [shape = 'u8[12288]{0}', space=vmem, size = 0x3000, scoped, tag = 'input window, operand 0, single buffered']
    #allocation3 [shape = 's32[1]{0}', space=sflag, size = 0x4, scoped, tag = 'scoped memory for tpu_custom_call.1']
    #allocation4 [shape = 's32[1]{0}', space=sflag, size = 0x4, scoped, tag = 'scoped memory for tpu_custom_call.1']
    #allocation5 [shape = 'u8[16384]{0}', space=vmem, size = 0x4000, scoped, tag = 'input window, operand 3, single buffered']
    #allocation6 [shape = 's32[1]{0}', space=sflag, size = 0x4, scoped, tag = 'scoped memory for tpu_custom_call.1']
    #allocation7 [shape = 'u8[16384]{0}', space=vmem, size = 0x4000, scoped, tag = 'output window, operand 0, single buffered']
    %9 = vsyncpa [#allocation3], 0
    %10 = vsyncpa [#allocation6], 0
    %11 = vsyncpa [#allocation4], 0
    // Predicated region
    $region2: #{tpu_custom_call.1} parent=1 // pred_check
      _
    $region3: #{tpu_custom_call.1} parent=1 // pred_check_branch
      %13 = sbr.rel (0) target = $region5
    $region4: #{tpu_custom_call.1} parent=1 // pred_region
      %15 = vsyncadd [#allocation3], 0
      %s16 = sshll.u32 %s0, 4
      %s17 = int_to_ptr.hbm [resolvable:$true] %s16
      %s18 = sshll.u32 [#allocation2], 4
      %s19 = int_to_ptr.vmem [resolvable:$true] %s18
      %24 = dma.hbm_to_vmem [thread:$0]  %s17, 384, %s19, [#allocation3], 192, 192, 12
    $region5: #{tpu_custom_call.1} parent=1 // pred_fallthru
      _
    // Predicated region
    $region6: #{tpu_custom_call.1} parent=1 // pred_check
      _
    $region7: #{tpu_custom_call.1} parent=1 // pred_check_branch
      %26 = sbr.rel (0) target = $region9
    $region8: #{tpu_custom_call.1} parent=1 // pred_region
      _
    $region9: #{tpu_custom_call.1} parent=1 // pred_fallthru
      _
    // Predicated region
    $region10: #{tpu_custom_call.1} parent=1 // pred_check
      _
    $region11: #{tpu_custom_call.1} parent=1 // pred_check_branch
      %28 = sbr.rel (0) target = $region13
    $region12: #{tpu_custom_call.1} parent=1 // pred_region
      _
    $region13: #{tpu_custom_call.1} parent=1 // pred_fallthru
      _
    // Predicated region
    $region14: #{tpu_custom_call.1} parent=1 // pred_check
      _
    $region15: #{tpu_custom_call.1} parent=1 // pred_check_branch
      %30 = sbr.rel (0) target = $region17
    $region16: #{tpu_custom_call.1} parent=1 // pred_region
      %32 = vsyncadd [#allocation6], 0
      %s33 = sshll.u32 %s3, 4
      %s34 = int_to_ptr.hbm [resolvable:$true] %s33
      %s35 = sshll.u32 [#allocation5], 4
      %s36 = int_to_ptr.vmem [resolvable:$true] %s35
      %41 = dma.hbm_to_vmem [thread:$0]  %s34, 512, %s36, [#allocation6], 256, 256, 16
    $region17: #{tpu_custom_call.1} parent=1 // pred_fallthru
      _
    // Predicated region
    $region18: #{tpu_custom_call.1} parent=1 // pred_check
      _
    $region19: #{tpu_custom_call.1} parent=1 // pred_check_branch
      %43 = sbr.rel (0) target = $region21
    $region20: #{tpu_custom_call.1} parent=1 // pred_region
      %45 = dma.done [#allocation3], 384
    $region21: #{tpu_custom_call.1} parent=1 // pred_fallthru
      _
    // Predicated region
    $region22: #{tpu_custom_call.1} parent=1 // pred_check
      _
    $region23: #{tpu_custom_call.1} parent=1 // pred_check_branch
      %47 = sbr.rel (0) target = $region25
    $region24: #{tpu_custom_call.1} parent=1 // pred_region
      %49 = dma.done [#allocation6], 512
    $region25: #{tpu_custom_call.1} parent=1 // pred_fallthru
      _
    %v51 = vld [vmem:[%s1] sm:$0xf]
    %v52 = vld [vmem:[%s2] sm:$0xff]
    %v53 = vld [vmem:[#allocation2] sm:$0xff]
    %v54 = vld [vmem:[#allocation2 + $0x8] sm:$0xf]
    %56 = vst [vmem:[#allocation1] ss:$2 sm:$0xff] %v53
    %v57 = vld.sshfl [vmem:[#allocation1] sm:$0xff pattern:$0x75316420]
    %v58 = vld.sshfl [vmem:[#allocation1 + $0x8] sm:$0xff pattern:$0x75316420]
    %s62 = scalar_lea.vmem [#allocation1], 1
    %63 = vst [vmem:[%s62] ss:$2 sm:$0xff] %v53
    %s64 = scalar_lea.vmem [#allocation1], 17
    %65 = vst [vmem:[%s64] ss:$2 sm:$0xff] %v54
    %v66 = vld.sshfl [vmem:[#allocation1] sm:$0xff pattern:$0x75316420]
    %v67 = vld.sshfl [vmem:[#allocation1 + $0x8] sm:$0xff pattern:$0x75316420]
    %v68 = vld.sshfl [vmem:[#allocation1 + $0x10] sm:$0xff pattern:$0x75316420]
    %69 = vrot.lane.b32.xlu0 %v66, 127
    %v70 = vpop.permute.xlu0 %69
    %71 = vrot.lane.b32.xlu0 %v67, 127
    %v72 = vpop.permute.xlu0 %71
    %73 = vrot.lane.b32.xlu0 %v68, 127
    %v74 = vpop.permute.xlu0 %73
    %vm75 = vcmask 1039360
    %v76 = vsel %vm75, %v70, %v72
    %v77 = vsel %vm75, %v72, %v74
    %80 = vst [vmem:[#allocation1] ss:$2 sm:$0xff] %v53
    %s81 = scalar_lea.vmem [#allocation1], 16
    %82 = vst [vmem:[%s81] ss:$2 sm:$0xff] %v54
    %v83 = vld.sshfl [vmem:[#allocation1] sm:$0xff pattern:$0x75316420]
    %v84 = vld.sshfl [vmem:[#allocation1 + $0x8] sm:$0xff pattern:$0x75316420]
    %v85 = vld.sshfl [vmem:[#allocation1 + $0x10] sm:$0xff pattern:$0x75316420]
    %86 = vrot.lane.b32.xlu0 %v83, 126
    %v87 = vpop.permute.xlu0 %86
    %88 = vrot.lane.b32.xlu0 %v84, 126
    %v89 = vpop.permute.xlu0 %88
    %90 = vrot.lane.b32.xlu0 %v85, 126
    %v91 = vpop.permute.xlu0 %90
    %vm92 = vcmask 1031168
    %v93 = vsel %vm92, %v87, %v89
    %v94 = vsel %vm92, %v89, %v91
    %s97 = scalar_lea.vmem [#allocation1], 1
    %98 = vst [vmem:[%s97] ss:$2 sm:$0xff] %v53
    %s99 = scalar_lea.vmem [#allocation1], 17
    %100 = vst [vmem:[%s99] ss:$2 sm:$0xff] %v54
    %v101 = vld.sshfl [vmem:[#allocation1] sm:$0xff pattern:$0x75316420]
    %v102 = vld.sshfl [vmem:[#allocation1 + $0x8] sm:$0xff pattern:$0x75316420]
    %v103 = vld.sshfl [vmem:[#allocation1 + $0x10] sm:$0xff pattern:$0x75316420]
    %104 = vrot.lane.b32.xlu0 %v101, 112
    %v105 = vpop.permute.xlu0 %104
    %106 = vrot.lane.b32.xlu0 %v102, 112
    %v107 = vpop.permute.xlu0 %106
    %108 = vrot.lane.b32.xlu0 %v103, 112
    %v109 = vpop.permute.xlu0 %108
    %vm110 = vcmask 916480
    %v111 = vsel %vm110, %v105, %v107
    %v112 = vsel %vm110, %v107, %v109
    %115 = vst [vmem:[#allocation1] ss:$2 sm:$0xff] %v53
    %s116 = scalar_lea.vmem [#allocation1], 16
    %117 = vst [vmem:[%s116] ss:$2 sm:$0xff] %v54
    %v118 = vld.sshfl [vmem:[#allocation1] sm:$0xff pattern:$0x75316420]
    %v119 = vld.sshfl [vmem:[#allocation1 + $0x8] sm:$0xff pattern:$0x75316420]
    %v120 = vld.sshfl [vmem:[#allocation1 + $0x10] sm:$0xff pattern:$0x75316420]
    %121 = vrot.lane.b32.xlu0 %v118, 111
    %v122 = vpop.permute.xlu0 %121
    %123 = vrot.lane.b32.xlu0 %v119, 111
    %v124 = vpop.permute.xlu0 %123
    %125 = vrot.lane.b32.xlu0 %v120, 111
    %v126 = vpop.permute.xlu0 %125
    %vm127 = vcmask 908288
    %v128 = vsel %vm127, %v122, %v124
    %v129 = vsel %vm127, %v124, %v126
    %s132 = scalar_lea.vmem [#allocation1], 1
    %133 = vst [vmem:[%s132] ss:$2 sm:$0xff] %v53
    %s134 = scalar_lea.vmem [#allocation1], 17
    %135 = vst [vmem:[%s134] ss:$2 sm:$0xff] %v54
    %v136 = vld.sshfl [vmem:[#allocation1] sm:$0xff pattern:$0x75316420]
    %v137 = vld.sshfl [vmem:[#allocation1 + $0x8] sm:$0xff pattern:$0x75316420]
    %v138 = vld.sshfl [vmem:[#allocation1 + $0x10] sm:$0xff pattern:$0x75316420]
    %139 = vrot.lane.b32.xlu0 %v136, 110
    %v140 = vpop.permute.xlu0 %139
    %141 = vrot.lane.b32.xlu0 %v137, 110
    %v142 = vpop.permute.xlu0 %141
    %143 = vrot.lane.b32.xlu0 %v138, 110
    %v144 = vpop.permute.xlu0 %143
    %vm145 = vcmask 900096
    %v146 = vsel %vm145, %v140, %v142
    %v147 = vsel %vm145, %v142, %v144
    %150 = vst [vmem:[#allocation1] ss:$2 sm:$0xff] %v53
    %s151 = scalar_lea.vmem [#allocation1], 16
    %152 = vst [vmem:[%s151] ss:$2 sm:$0xff] %v54
    %v153 = vld.sshfl [vmem:[#allocation1] sm:$0xff pattern:$0x75316420]
    %v154 = vld.sshfl [vmem:[#allocation1 + $0x8] sm:$0xff pattern:$0x75316420]
    %v155 = vld.sshfl [vmem:[#allocation1 + $0x10] sm:$0xff pattern:$0x75316420]
    %156 = vrot.lane.b32.xlu0 %v153, 96
    %v157 = vpop.permute.xlu0 %156
    %158 = vrot.lane.b32.xlu0 %v154, 96
    %v159 = vpop.permute.xlu0 %158
    %160 = vrot.lane.b32.xlu0 %v155, 96
    %v161 = vpop.permute.xlu0 %160
    %vm162 = vcmask 785408
    %v163 = vsel %vm162, %v157, %v159
    %v164 = vsel %vm162, %v159, %v161
    %s167 = scalar_lea.vmem [#allocation1], 1
    %168 = vst [vmem:[%s167] ss:$2 sm:$0xff] %v53
    %s169 = scalar_lea.vmem [#allocation1], 17
    %170 = vst [vmem:[%s169] ss:$2 sm:$0xff] %v54
    %v171 = vld.sshfl [vmem:[#allocation1] sm:$0xff pattern:$0x75316420]
    %v172 = vld.sshfl [vmem:[#allocation1 + $0x8] sm:$0xff pattern:$0x75316420]
    %v173 = vld.sshfl [vmem:[#allocation1 + $0x10] sm:$0xff pattern:$0x75316420]
    %174 = vrot.lane.b32.xlu0 %v171, 95
    %v175 = vpop.permute.xlu0 %174
    %176 = vrot.lane.b32.xlu0 %v172, 95
    %v177 = vpop.permute.xlu0 %176
    %178 = vrot.lane.b32.xlu0 %v173, 95
    %v179 = vpop.permute.xlu0 %178
    %vm180 = vcmask 777216
    %v181 = vsel %vm180, %v175, %v177
    %v182 = vsel %vm180, %v177, %v179
    %185 = vst [vmem:[#allocation1] ss:$2 sm:$0xff] %v53
    %s186 = scalar_lea.vmem [#allocation1], 16
    %187 = vst [vmem:[%s186] ss:$2 sm:$0xff] %v54
    %v188 = vld.sshfl [vmem:[#allocation1] sm:$0xff pattern:$0x75316420]
    %v189 = vld.sshfl [vmem:[#allocation1 + $0x8] sm:$0xff pattern:$0x75316420]
    %v190 = vld.sshfl [vmem:[#allocation1 + $0x10] sm:$0xff pattern:$0x75316420]
    %191 = vrot.lane.b32.xlu0 %v188, 94
    %v192 = vpop.permute.xlu0 %191
    %193 = vrot.lane.b32.xlu0 %v189, 94
    %v194 = vpop.permute.xlu0 %193
    %195 = vrot.lane.b32.xlu0 %v190, 94
    %v196 = vpop.permute.xlu0 %195
    %vm197 = vcmask 769024
    %v198 = vsel %vm197, %v192, %v194
    %v199 = vsel %vm197, %v194, %v196
    %vm202 = vcmask 1043456
    %v203 = vsel %vm202, %v57, %v76
    %v204 = vsel %vm202, %v58, %v77
    %v205 = vsel %vm202, %v93, %v111
    %v206 = vsel %vm202, %v94, %v112
    %v207 = vsel %vm202, %v128, %v146
    %v208 = vsel %vm202, %v129, %v147
    %v209 = vsel %vm202, %v163, %v181
    %v210 = vsel %vm202, %v164, %v182
    %v211 = vsel %vm202, %v198, 0.0
    %v212 = vsel %vm202, %v199, 0.0
    %v213 = vpack.c.bf16 %v205, %v203
    %v214 = vpack.c.bf16 %v206, %v204
    %v215 = vpack.c.bf16 %v209, %v207
    %v216 = vpack.c.bf16 %v210, %v208
    %v217 = vpack.c.bf16 0.0, %v211
    %v218 = vpack.c.bf16 0.0, %v212
    %220 = vset.pattern.permute.xlu0 0
    %221 = vperm.xlu0 %220, %v52
    %v222 = vpop.permute.xlu0 %221
    %vm224 = vcmask 392192
    %v226 = vsel %vm224, %v51, 0
    %228 = vmatpush.bf16.msra.mxu0 0
    %229 = vmatpush.bf16.msra.mxu0 0
    %230 = vmatpush.bf16.msra.mxu0 0
    %231 = vmatpush.bf16.msra.mxu0 0
    %232 = vmatpush.bf16.msra.mxu0 0
    %233 = vmatpush.bf16.msra.mxu0 %v217
    %234 = vmatpush.bf16.msra.mxu0 %v215
    %235 = vmatpush.bf16.msra.mxu0 %v213
    %236 = vmatmul.bf16.gmra.mxu0 %v226
    %v237 = vpop.f32.mrf.mxu0
    %v238 = vadd.f32 %v222, %v237
    %v239 = vpop.f32.mrf.mxu0
    %240 = vdwg.mxu0
    %241 = vmatpush.bf16.msra.mxu0 0
    %242 = vmatpush.bf16.msra.mxu0 0
    %243 = vmatpush.bf16.msra.mxu0 0
    %244 = vmatpush.bf16.msra.mxu0 0
    %245 = vmatpush.bf16.msra.mxu0 0
    %246 = vmatpush.bf16.msra.mxu0 %v218
    %247 = vmatpush.bf16.msra.mxu0 %v216
    %248 = vmatpush.bf16.msra.mxu0 %v214
    %249 = vmatmul.bf16.gmra.mxu0 %v226
    %v250 = vpop.f32.mrf.mxu0
    %v251 = vadd.f32 %v222, %v250
    %v252 = vpop.f32.mrf.mxu0
    %253 = vdwg.mxu0
    %v254 = vld [vmem:[#allocation5] sm:$0xff]
    %v255 = vld [vmem:[#allocation5 + $0x8] sm:$0xff]
    %v256 = vadd.f32 %v238, %v254
    %v257 = vadd.f32 %v251, %v255
    %v258 = vmax.f32 %v256, 0.0
    %v259 = vmax.f32 %v257, 0.0
    %260 = vst [vmem:[#allocation7] sm:$0xff] %v258
    %261 = vst [vmem:[#allocation7 + $0x8] sm:$0xff] %v259
    %s262 = scalar_lea.vmem [#allocation2], 12
    %v263 = vld [vmem:[%s262] sm:$0xff]
    %v264 = vld [vmem:[%s262 + $0x8] sm:$0xf]
    %266 = vst [vmem:[#allocation1] ss:$2 sm:$0xff] %v263
    %v267 = vld.sshfl [vmem:[#allocation1] sm:$0xff pattern:$0x75316420]
    %v268 = vld.sshfl [vmem:[#allocation1 + $0x8] sm:$0xff pattern:$0x75316420]
    %s272 = scalar_lea.vmem [#allocation1], 1
    %273 = vst [vmem:[%s272] ss:$2 sm:$0xff] %v263
    %s274 = scalar_lea.vmem [#allocation1], 17
    %275 = vst [vmem:[%s274] ss:$2 sm:$0xff] %v264
    %v276 = vld.sshfl [vmem:[#allocation1] sm:$0xff pattern:$0x75316420]
    %v277 = vld.sshfl [vmem:[#allocation1 + $0x8] sm:$0xff pattern:$0x75316420]
    %v278 = vld.sshfl [vmem:[#allocation1 + $0x10] sm:$0xff pattern:$0x75316420]
    %279 = vrot.lane.b32.xlu0 %v276, 127
    %v280 = vpop.permute.xlu0 %279
    %281 = vrot.lane.b32.xlu0 %v277, 127
    %v282 = vpop.permute.xlu0 %281
    %283 = vrot.lane.b32.xlu0 %v278, 127
    %v284 = vpop.permute.xlu0 %283
    %v285 = vsel %vm75, %v280, %v282
    %v286 = vsel %vm75, %v282, %v284
    %289 = vst [vmem:[#allocation1] ss:$2 sm:$0xff] %v263
    %s290 = scalar_lea.vmem [#allocation1], 16
    %291 = vst [vmem:[%s290] ss:$2 sm:$0xff] %v264
    %v292 = vld.sshfl [vmem:[#allocation1] sm:$0xff pattern:$0x75316420]
    %v293 = vld.sshfl [vmem:[#allocation1 + $0x8] sm:$0xff pattern:$0x75316420]
    %v294 = vld.sshfl [vmem:[#allocation1 + $0x10] sm:$0xff pattern:$0x75316420]
    %295 = vrot.lane.b32.xlu0 %v292, 126
    %v296 = vpop.permute.xlu0 %295
    %297 = vrot.lane.b32.xlu0 %v293, 126
    %v298 = vpop.permute.xlu0 %297
    %299 = vrot.lane.b32.xlu0 %v294, 126
    %v300 = vpop.permute.xlu0 %299
    %v301 = vsel %vm92, %v296, %v298
    %v302 = vsel %vm92, %v298, %v300
    %s305 = scalar_lea.vmem [#allocation1], 1
    %306 = vst [vmem:[%s305] ss:$2 sm:$0xff] %v263
    %s307 = scalar_lea.vmem [#allocation1], 17
    %308 = vst [vmem:[%s307] ss:$2 sm:$0xff] %v264
    %v309 = vld.sshfl [vmem:[#allocation1] sm:$0xff pattern:$0x75316420]
    %v310 = vld.sshfl [vmem:[#allocation1 + $0x8] sm:$0xff pattern:$0x75316420]
    %v311 = vld.sshfl [vmem:[#allocation1 + $0x10] sm:$0xff pattern:$0x75316420]
    %312 = vrot.lane.b32.xlu0 %v309, 112
    %v313 = vpop.permute.xlu0 %312
    %314 = vrot.lane.b32.xlu0 %v310, 112
    %v315 = vpop.permute.xlu0 %314
    %316 = vrot.lane.b32.xlu0 %v311, 112
    %v317 = vpop.permute.xlu0 %316
    %v318 = vsel %vm110, %v313, %v315
    %v319 = vsel %vm110, %v315, %v317
    %322 = vst [vmem:[#allocation1] ss:$2 sm:$0xff] %v263
    %s323 = scalar_lea.vmem [#allocation1], 16
    %324 = vst [vmem:[%s323] ss:$2 sm:$0xff] %v264
    %v325 = vld.sshfl [vmem:[#allocation1] sm:$0xff pattern:$0x75316420]
    %v326 = vld.sshfl [vmem:[#allocation1 + $0x8] sm:$0xff pattern:$0x75316420]
    %v327 = vld.sshfl [vmem:[#allocation1 + $0x10] sm:$0xff pattern:$0x75316420]
    %328 = vrot.lane.b32.xlu0 %v325, 111
    %v329 = vpop.permute.xlu0 %328
    %330 = vrot.lane.b32.xlu0 %v326, 111
    %v331 = vpop.permute.xlu0 %330
    %332 = vrot.lane.b32.xlu0 %v327, 111
    %v333 = vpop.permute.xlu0 %332
    %v334 = vsel %vm127, %v329, %v331
    %v335 = vsel %vm127, %v331, %v333
    %s338 = scalar_lea.vmem [#allocation1], 1
    %339 = vst [vmem:[%s338] ss:$2 sm:$0xff] %v263
    %s340 = scalar_lea.vmem [#allocation1], 17
    %341 = vst [vmem:[%s340] ss:$2 sm:$0xff] %v264
    %v342 = vld.sshfl [vmem:[#allocation1] sm:$0xff pattern:$0x75316420]
    %v343 = vld.sshfl [vmem:[#allocation1 + $0x8] sm:$0xff pattern:$0x75316420]
    %v344 = vld.sshfl [vmem:[#allocation1 + $0x10] sm:$0xff pattern:$0x75316420]
    %345 = vrot.lane.b32.xlu0 %v342, 110
    %v346 = vpop.permute.xlu0 %345
    %347 = vrot.lane.b32.xlu0 %v343, 110
    %v348 = vpop.permute.xlu0 %347
    %349 = vrot.lane.b32.xlu0 %v344, 110
    %v350 = vpop.permute.xlu0 %349
    %v351 = vsel %vm145, %v346, %v348
    %v352 = vsel %vm145, %v348, %v350
    %355 = vst [vmem:[#allocation1] ss:$2 sm:$0xff] %v263
    %s356 = scalar_lea.vmem [#allocation1], 16
    %357 = vst [vmem:[%s356] ss:$2 sm:$0xff] %v264
    %v358 = vld.sshfl [vmem:[#allocation1] sm:$0xff pattern:$0x75316420]
    %v359 = vld.sshfl [vmem:[#allocation1 + $0x8] sm:$0xff pattern:$0x75316420]
    %v360 = vld.sshfl [vmem:[#allocation1 + $0x10] sm:$0xff pattern:$0x75316420]
    %361 = vrot.lane.b32.xlu0 %v358, 96
    %v362 = vpop.permute.xlu0 %361
    %363 = vrot.lane.b32.xlu0 %v359, 96
    %v364 = vpop.permute.xlu0 %363
    %365 = vrot.lane.b32.xlu0 %v360, 96
    %v366 = vpop.permute.xlu0 %365
    %v367 = vsel %vm162, %v362, %v364
    %v368 = vsel %vm162, %v364, %v366
    %s371 = scalar_lea.vmem [#allocation1], 1
    %372 = vst [vmem:[%s371] ss:$2 sm:$0xff] %v263
    %s373 = scalar_lea.vmem [#allocation1], 17
    %374 = vst [vmem:[%s373] ss:$2 sm:$0xff] %v264
    %v375 = vld.sshfl [vmem:[#allocation1] sm:$0xff pattern:$0x75316420]
    %v376 = vld.sshfl [vmem:[#allocation1 + $0x8] sm:$0xff pattern:$0x75316420]
    %v377 = vld.sshfl [vmem:[#allocation1 + $0x10] sm:$0xff pattern:$0x75316420]
    %378 = vrot.lane.b32.xlu0 %v375, 95
    %v379 = vpop.permute.xlu0 %378
    %380 = vrot.lane.b32.xlu0 %v376, 95
    %v381 = vpop.permute.xlu0 %380
    %382 = vrot.lane.b32.xlu0 %v377, 95
    %v383 = vpop.permute.xlu0 %382
    %v384 = vsel %vm180, %v379, %v381
    %v385 = vsel %vm180, %v381, %v383
    %388 = vst [vmem:[#allocation1] ss:$2 sm:$0xff] %v263
    %s389 = scalar_lea.vmem [#allocation1], 16
    %390 = vst [vmem:[%s389] ss:$2 sm:$0xff] %v264
    %v391 = vld.sshfl [vmem:[#allocation1] sm:$0xff pattern:$0x75316420]
    %v392 = vld.sshfl [vmem:[#allocation1 + $0x8] sm:$0xff pattern:$0x75316420]
    %v393 = vld.sshfl [vmem:[#allocation1 + $0x10] sm:$0xff pattern:$0x75316420]
    %394 = vrot.lane.b32.xlu0 %v391, 94
    %v395 = vpop.permute.xlu0 %394
    %396 = vrot.lane.b32.xlu0 %v392, 94
    %v397 = vpop.permute.xlu0 %396
    %398 = vrot.lane.b32.xlu0 %v393, 94
    %v399 = vpop.permute.xlu0 %398
    %v400 = vsel %vm197, %v395, %v397
    %v401 = vsel %vm197, %v397, %v399
    %v404 = vsel %vm202, %v267, %v285
    %v405 = vsel %vm202, %v268, %v286
    %v406 = vsel %vm202, %v301, %v318
    %v407 = vsel %vm202, %v302, %v319
    %v408 = vsel %vm202, %v334, %v351
    %v409 = vsel %vm202, %v335, %v352
    %v410 = vsel %vm202, %v367, %v384
    %v411 = vsel %vm202, %v368, %v385
    %v412 = vsel %vm202, %v400, 0.0
    %v413 = vsel %vm202, %v401, 0.0
    %v414 = vpack.c.bf16 %v406, %v404
    %v415 = vpack.c.bf16 %v407, %v405
    %v416 = vpack.c.bf16 %v410, %v408
    %v417 = vpack.c.bf16 %v411, %v409
    %v418 = vpack.c.bf16 0.0, %v412
    %v419 = vpack.c.bf16 0.0, %v413
    %420 = vmatpush.bf16.msra.mxu0 0
    %421 = vmatpush.bf16.msra.mxu0 0
    %422 = vmatpush.bf16.msra.mxu0 0
    %423 = vmatpush.bf16.msra.mxu0 0
    %424 = vmatpush.bf16.msra.mxu0 0
    %425 = vmatpush.bf16.msra.mxu0 %v418
    %426 = vmatpush.bf16.msra.mxu0 %v416
    %427 = vmatpush.bf16.msra.mxu0 %v414
    %428 = vmatmul.bf16.gmra.mxu0 %v226
    %v429 = vpop.f32.mrf.mxu0
    %v430 = vadd.f32 %v222, %v429
    %v431 = vpop.f32.mrf.mxu0
    %432 = vdwg.mxu0
    %433 = vmatpush.bf16.msra.mxu0 0
    %434 = vmatpush.bf16.msra.mxu0 0
    %435 = vmatpush.bf16.msra.mxu0 0
    %436 = vmatpush.bf16.msra.mxu0 0
    %437 = vmatpush.bf16.msra.mxu0 0
    %438 = vmatpush.bf16.msra.mxu0 %v419
    %439 = vmatpush.bf16.msra.mxu0 %v417
    %440 = vmatpush.bf16.msra.mxu0 %v415
    %441 = vmatmul.bf16.gmra.mxu0 %v226
    %v442 = vpop.f32.mrf.mxu0
    %v443 = vadd.f32 %v222, %v442
    %v444 = vpop.f32.mrf.mxu0
    %445 = vdwg.mxu0
    %s446 = scalar_lea.vmem [#allocation5], 16
    %v447 = vld [vmem:[%s446] sm:$0xff]
    %v448 = vld [vmem:[%s446 + $0x8] sm:$0xff]
    %v449 = vadd.f32 %v430, %v447
    %v450 = vadd.f32 %v443, %v448
    %v451 = vmax.f32 %v449, 0.0
    %v452 = vmax.f32 %v450, 0.0
    %s453 = scalar_lea.vmem [#allocation7], 16
    %454 = vst [vmem:[%s453] sm:$0xff] %v451
    %455 = vst [vmem:[%s453 + $0x8] sm:$0xff] %v452
    // Predicated region
    $region26: #{tpu_custom_call.1} parent=1 // pred_check
      _
    $region27: #{tpu_custom_call.1} parent=1 // pred_check_branch
      %457 = sbr.rel (0) target = $region29
    $region28: #{tpu_custom_call.1} parent=1 // pred_region
      %459 = vsyncadd [#allocation4], 0
      %s460 = sshll.u32 [#allocation7], 4
      %s461 = int_to_ptr.vmem [resolvable:$true] %s460
      %s462 = sshll.u32 %s4, 4
      %s463 = int_to_ptr.hbm [resolvable:$true] %s462
      %468 = dma.vmem_to_hbm [thread:$0]  %s461, 512, %s463, [#allocation4], 256, 256, 16
    $region29: #{tpu_custom_call.1} parent=1 // pred_fallthru
      _
    // Predicated region
    $region30: #{tpu_custom_call.1} parent=1 // pred_check
      _
    $region31: #{tpu_custom_call.1} parent=1 // pred_check_branch
      %470 = sbr.rel (0) target = $region33
    $region32: #{tpu_custom_call.1} parent=1 // pred_region
      %472 = dma.done [#allocation4], 512
    $region33: #{tpu_custom_call.1} parent=1 // pred_fallthru
      _
    %473 = vsyncpa [#allocation3], 1
    %474 = vsyncpa [#allocation6], 1
    %475 = vsyncpa [#allocation4], 1

</llo_original>
